<compile_context>
chip_gen: v5e
topology: v5e:2x2
jax: 0.10.0
libtpu: 0.0.40
codegen_flags: <defaults>
</compile_context>

<pallas_src>
import functools

import jax
import jax.numpy as jnp
from jax.experimental import pallas as pl
from jax.experimental.pallas import tpu as pltpu

EPS = 1e-5  # matches nn.LayerNorm default


def _round_up(n, m):
    return ((n + m - 1) // m) * m


def _cdiv(a, b):
    return -(-a // b)


def _vmem_capacity_bytes():
    """Physical VMEM per TensorCore; conservative (v7x) fallback."""
    try:
        info = pltpu.get_tpu_info()
        cap = getattr(info, "vmem_capacity_bytes", None)
        if cap:
            return int(cap)
    except Exception:
        pass
    return 64 << 20


def prenorm_linear_kernel(x_ref, wt_ref, b_ref, o_ref, *, d_true):
    # x_ref:  (TM, Dp)  token tile, feature dim zero-padded to Dp (revisited
    #                   across the N grid axis; Pallas skips the re-fetch).
    # wt_ref: (Dp, TN)  pre-transposed effective weight slice gamma[:,None]*W^T
    # b_ref:  (1, TN)   effective bias slice  W @ beta + b
    # o_ref:  (TM, TN)  output tile
    x = x_ref[...].astype(jnp.float32)

    # LayerNorm statistics over the TRUE feature dim (biased variance, like
    # PyTorch).  Padded lanes of x are zero, so sum(x) and sum(x*x) are exact
    # over the true dim; no lane mask needed.
    inv_d = 1.0 / d_true
    mean = jnp.sum(x, axis=-1, keepdims=True) * inv_d
    var = jnp.sum(x * x, axis=-1, keepdims=True) * inv_d - mean * mean
    inv = jax.lax.rsqrt(var + EPS)
    n = (x - mean) * inv
    # Padded lanes of n are (-mean*inv) != 0, but the corresponding weight
    # rows are zero, so they cannot leak into the matmul.

    out = jnp.dot(n.astype(wt_ref.dtype), wt_ref[...],
                  preferred_element_type=jnp.float32)
    out = out + b_ref[...].astype(jnp.float32)
    o_ref[...] = out.astype(o_ref.dtype)


def prenorm(x, gamma, beta, w, b, *, tile_rows=512):
    """PreNorm forward: Linear(LayerNorm(x)).

    x: [B, S, D]; gamma/beta: [D]; w: [D, D] (nn.Linear (out,in) layout); b: [D].
    Pass a bf16 `w` to halve resident VMEM / weight DMA when accuracy allows.
    """
    B, S, D = x.shape
    M = B * S

    # Fold the LayerNorm affine into the Linear parameters (host-side, once),
    # computed in f32 and cast ONCE to the weight dtype (no double rounding):
    #   (n*gamma + beta) @ W^T + b == n @ (gamma[:,None]*W^T) + (W @ beta + b)
    wt_eff = (gamma.astype(jnp.float32)[:, None]
              * w.T.astype(jnp.float32)).astype(w.dtype)          # (D_in, D_out)
    b_eff = (w.astype(jnp.float32) @ beta.astype(jnp.float32)
             + b.astype(jnp.float32))                             # (D,), f32

    Dp = _round_up(D, 128)                 # lane-dense feature dim
    x_itemsize = jnp.dtype(x.dtype).itemsize
    w_itemsize = jnp.dtype(wt_eff.dtype).itemsize

    vmem_cap = _vmem_capacity_bytes()
    budget = int(vmem_cap * 0.70)          # leave headroom for Mosaic scratch

    # ---- N (output-feature) tiling: keep the weight footprint bounded ----
    resident_w_bytes = Dp * Dp * w_itemsize
    if resident_w_bytes <= min(budget // 3, 24 << 20):
        tn, n_bufs_w = Dp, 1               # fully resident, single-buffered
    else:
        tn, n_bufs_w = 128, 2              # streamed (double-buffered) slices
        for cand in (2048, 1024, 512, 256):
            if Dp % cand == 0 and 2 * Dp * cand * w_itemsize <= budget // 2:
                tn = cand
                break
    grid_n = Dp // tn

    # ---- M (token) tiling: big tiles (mem-bound roofline), even split, and
    # >= 2 row steps when possible so both v7x TensorCores get work. ----
    tm_req = max(8, min(int(tile_rows), _round_up(M, 8)))
    num_row_tiles = _cdiv(M, tm_req)
    if M > 8:
        num_row_tiles = max(num_row_tiles, 2)
    tm = _round_up(_cdiv(M, num_row_tiles), 8)

    def _footprint(tm_):
        f32_tmp = 4 * tm_ * Dp * 4                                  # x, x*x, n, f32 out
        io_bufs = 2 * tm_ * Dp * x_itemsize + 2 * tm_ * tn * x_itemsize
        w_bufs = n_bufs_w * Dp * tn * w_itemsize + n_bufs_w * tn * 4
        return f32_tmp + io_bufs + w_bufs

    while tm > 8 and _footprint(tm) > budget:
        num_row_tiles *= 2
        tm = _round_up(_cdiv(M, num_row_tiles), 8)
    num_row_tiles = min(num_row_tiles, _cdiv(M, 8))
    tm = _round_up(_cdiv(M, num_row_tiles), 8)
    Mp = tm * num_row_tiles
    grid_m = num_row_tiles

    # ---- Host-side padding only when shapes do not already align ----
    xf = x.reshape(M, D)
    if (Mp, Dp) != (M, D):
        xf = jnp.pad(xf, ((0, Mp - M), (0, Dp - D)))
    if Dp != D:
        wt_p = jnp.pad(wt_eff, ((0, Dp - D), (0, Dp - D)))
        b_p = jnp.pad(b_eff, (0, Dp - D))
    else:
        wt_p, b_p = wt_eff, b_eff
    b_p = b_p.reshape(1, Dp)

    # ---- Compiler params: scoped-VMEM limit (v5e default is only 16 MiB) ----
    est_bytes = _footprint(tm)
    cp_kwargs = dict(dimension_semantics=("parallel", "arbitrary"))
    if est_bytes > (12 << 20):
        cp_kwargs["vmem_limit_bytes"] = min(int(est_bytes * 1.25) + (2 << 20),
                                            int(vmem_cap * 0.80))

    # ---- Block specs ----
    x_spec = pl.BlockSpec((tm, Dp), lambda i, j: (i, 0))
    if grid_n == 1:
        # Constant index map: nothing to pipeline -> single-buffer the weight
        # and bias (halves their VMEM footprint).
        w_spec = pl.BlockSpec((Dp, tn), lambda i, j: (0, j),
                              pipeline_mode=pl.Buffered(1))
        b_spec = pl.BlockSpec((1, tn), lambda i, j: (0, j),
                              pipeline_mode=pl.Buffered(1))
    else:
        w_spec = pl.BlockSpec((Dp, tn), lambda i, j: (0, j))
        b_spec = pl.BlockSpec((1, tn), lambda i, j: (0, j))
    out_spec = pl.BlockSpec((tm, tn), lambda i, j: (i, j))

    cost = pl.CostEstimate(
        flops=2 * Mp * Dp * Dp + 8 * Mp * Dp,
        transcendentals=Mp,
        bytes_accessed=(2 * Mp * Dp * x_itemsize                        # x + out
                        + (grid_m if grid_n > 1 else 1) * Dp * Dp * w_itemsize
                        + Dp * 4))

    kernel = functools.partial(prenorm_linear_kernel, d_true=D)

    out = pl.pallas_call(
        kernel,
        out_shape=jax.ShapeDtypeStruct((Mp, Dp), x.dtype),
        grid_spec=pltpu.PrefetchScalarGridSpec(
            num_scalar_prefetch=0,
            grid=(grid_m, grid_n),
            in_specs=[x_spec, w_spec, b_spec],
            out_specs=out_spec,
        ),
        compiler_params=pltpu.CompilerParams(**cp_kwargs),
        cost_estimate=cost,
    )(xf, wt_p, b_p)

    if (Mp, Dp) != (M, D):
        out = out[:M, :D]
    return out.reshape(B, S, D)


def prenorm_ref(x, gamma, beta, w, b):
    xf = x.astype(jnp.float32)
    mean = jnp.mean(xf, axis=-1, keepdims=True)
    var = jnp.mean((xf - mean) ** 2, axis=-1, keepdims=True)
    y = (xf - mean) * jax.lax.rsqrt(var + EPS) * gamma + beta
    return (y @ w.T.astype(jnp.float32) + b).astype(x.dtype)


if __name__ == "__main__":
    # Small shapes consistent with the transformer usage: tokens of size `dim`.
    batch, seq, dim = 2, 8, 32

    key = jax.random.PRNGKey(0)
    kx, kg, kb, kw, kbi = jax.random.split(key, 5)

    x = jax.random.normal(kx, (batch, seq, dim), dtype=jnp.float32)

    # LayerNorm params (nn.LayerNorm init is weight=1, bias=0; perturbed so the
    # affine path is actually exercised).
    gamma = 1.0 + 0.1 * jax.random.normal(kg, (dim,), dtype=jnp.float32)
    beta = 0.1 * jax.random.normal(kb, (dim,), dtype=jnp.float32)

    # fn = Linear(dim, dim) params, deterministic init.
    # TODO(synk): `fn` is an arbitrary nn.Module in the original PreNorm; here
    # it is fixed to a Linear(dim, dim) fused into the kernel.
    w = jax.random.normal(kw, (dim, dim), dtype=jnp.float32) / jnp.sqrt(dim)
    b = 0.1 * jax.random.normal(kbi, (dim,), dtype=jnp.float32)

    out = prenorm(x, gamma, beta, w, b)
    jax.block_until_ready(out)

    ref = prenorm_ref(x, gamma, beta, w, b)
    assert out.shape == (batch, seq, dim)
    assert jnp.allclose(out, ref, atol=1e-4, rtol=1e-4), "mismatch vs reference"

    print("KERNEL_OK")
</pallas_src>

<mosaic_0001>
module attributes {stable_mosaic.version = 11 : i64} {
  func.func @prenorm_linear_kernel(%arg0: i32, %arg1: i32, %arg2: memref<8x128xf32, #tpu.memory_space<vmem>>, %arg3: memref<128x128xf32, #tpu.memory_space<vmem>>, %arg4: memref<1x128xf32, #tpu.memory_space<vmem>>, %arg5: memref<8x128xf32, #tpu.memory_space<vmem>>) attributes {dimension_semantics = [#tpu.dimension_semantics<parallel>, #tpu.dimension_semantics<arbitrary>], iteration_bounds = array<i64: 2, 1>, scalar_prefetch = 0 : i64, scratch_operands = 0 : i64, tpu.core_type = #tpu.core_type<tc>, window_params = [{transform_indices = @transform_0, window_bounds = array<i64: 8, 128>}, {pipeline_mode = #tpu.pipeline_mode<synchronous>, transform_indices = @transform_1, window_bounds = array<i64: 128, 128>}, {pipeline_mode = #tpu.pipeline_mode<synchronous>, transform_indices = @transform_2, window_bounds = array<i64: 1, 128>}, {transform_indices = @transform_3, window_bounds = array<i64: 8, 128>}]} {
    %c0 = arith.constant 0 : index
    %c0_0 = arith.constant 0 : index
    %0 = vector.load %arg2[%c0, %c0_0] : memref<8x128xf32, #tpu.memory_space<vmem>>, vector<8x128xf32>
    %cst = arith.constant dense<0.000000e+00> : vector<8xf32>
    %1 = vector.multi_reduction <add>, %0, %cst [1] : vector<8x128xf32> to vector<8xf32>
    %2 = vector.shape_cast %1 : vector<8xf32> to vector<8x1xf32>
    %cst_1 = arith.constant 3.125000e-02 : f32
    %3 = vector.broadcast %cst_1 : f32 to vector<8x1xf32>
    %4 = arith.mulf %2, %3 : vector<8x1xf32>
    %5 = arith.mulf %0, %0 : vector<8x128xf32>
    %cst_2 = arith.constant dense<0.000000e+00> : vector<8xf32>
    %6 = vector.multi_reduction <add>, %5, %cst_2 [1] : vector<8x128xf32> to vector<8xf32>
    %7 = vector.shape_cast %6 : vector<8xf32> to vector<8x1xf32>
    %cst_3 = arith.constant 3.125000e-02 : f32
    %8 = vector.broadcast %cst_3 : f32 to vector<8x1xf32>
    %9 = arith.mulf %7, %8 : vector<8x1xf32>
    %10 = arith.mulf %4, %4 : vector<8x1xf32>
    %11 = arith.subf %9, %10 : vector<8x1xf32>
    %cst_4 = arith.constant 9.99999974E-6 : f32
    %12 = vector.broadcast %cst_4 : f32 to vector<8x1xf32>
    %13 = arith.addf %11, %12 : vector<8x1xf32>
    %14 = math.rsqrt %13 : vector<8x1xf32>
    %15 = vector.broadcast %4 : vector<8x1xf32> to vector<8x128xf32>
    %16 = arith.subf %0, %15 : vector<8x128xf32>
    %17 = vector.broadcast %14 : vector<8x1xf32> to vector<8x128xf32>
    %18 = arith.mulf %16, %17 : vector<8x128xf32>
    %c0_5 = arith.constant 0 : index
    %c0_6 = arith.constant 0 : index
    %19 = vector.load %arg3[%c0_5, %c0_6] : memref<128x128xf32, #tpu.memory_space<vmem>>, vector<128x128xf32>
    %cst_7 = arith.constant dense<0.000000e+00> : vector<8x128xf32>
    %20 = tpu.matmul %18, %19, %cst_7 {dimension_numbers = #tpu.dot_dimension_numbers<[1], [0], [0], [1], [0, 0, 1, 1], [], []>} : vector<8x128xf32>, vector<128x128xf32>, vector<8x128xf32> -> vector<8x128xf32>
    %c0_8 = arith.constant 0 : index
    %c0_9 = arith.constant 0 : index
    %21 = vector.load %arg4[%c0_8, %c0_9] : memref<1x128xf32, #tpu.memory_space<vmem>>, vector<1x128xf32>
    %22 = vector.broadcast %21 : vector<1x128xf32> to vector<8x128xf32>
    %23 = arith.addf %20, %22 : vector<8x128xf32>
    %c0_10 = arith.constant 0 : index
    %c0_11 = arith.constant 0 : index
    %24 = vector.load %arg5[%c0_10, %c0_11] : memref<8x128xf32, #tpu.memory_space<vmem>>, vector<8x128xf32>
    tpu.vector_store %arg5[%c0_10, %c0_11], %23 {strides = array<i32>} : memref<8x128xf32, #tpu.memory_space<vmem>>, vector<8x128xf32>,
    return
  }
  func.func @transform_0(%arg0: i32, %arg1: i32) -> (i32, i32) {
    %c0_i32 = arith.constant 0 : i32
    %c0_i32_0 = arith.constant 0 : i32
    return %arg0, %c0_i32 : i32, i32
  }
  func.func @transform_1(%arg0: i32, %arg1: i32) -> (i32, i32) {
    %c0_i32 = arith.constant 0 : i32
    %c0_i32_0 = arith.constant 0 : i32
    return %c0_i32, %arg1 : i32, i32
  }
  func.func @transform_2(%arg0: i32, %arg1: i32) -> (i32, i32) {
    %c0_i32 = arith.constant 0 : i32
    %c0_i32_0 = arith.constant 0 : i32
    return %c0_i32, %arg1 : i32, i32
  }
  func.func @transform_3(%arg0: i32, %arg1: i32) -> (i32, i32) {
    %c0_i32 = arith.constant 0 : i32
    return %arg0, %arg1 : i32, i32
  }
}

</mosaic_0001>

<llo_original>
// kernel: tpu_custom_call.1
$region0: #{tpu_custom_call.1}
  #allocation0 [shape = 'u32[]', space=smem, size = 0x4, offset = 0x4, fixed_abs, tag = 'smem constant byte address 0x4 - core index']
  #allocation1 [shape = 'u32[72,128]{1,0:T(1,128)}', space=vmem, size = 0x9000, scoped, tag = 'internal scratch']
  %s0 = inlined_call_operand.hbm [shape: f32[16,128], index: 0, kind: input, shape index: {}]
  %s1 = inlined_call_operand.hbm [shape: f32[128,128], index: 1, kind: input, shape index: {}]
  %s2 = inlined_call_operand.vmem [shape: f32[1,128], index: 2, kind: input, shape index: {}]
  %s3 = inlined_call_operand.hbm [shape: f32[16,128], index: 3, kind: output, shape index: {}]
  %s4 = sld [smem:[#allocation0]]
  $region53: #{tpu_custom_call.1} parent=0
    _
  %s6 = ssub.s32 1, %s4
  %s7 = scalar_select 0, %s6, %s4
  $region1: #{tpu_custom_call.1} parent=0
    #allocation2 [shape = 'u8[8192]{0}', space=vmem, size = 0x2000, scoped, tag = 'input window, operand 0']
    #allocation3 [shape = 's32[2]{0}', space=sflag, size = 0x8, scoped, tag = 'scoped memory for tpu_custom_call.1']
    #allocation4 [shape = 's32[2]{0}', space=sflag, size = 0x8, scoped, tag = 'scoped memory for tpu_custom_call.1']
    #allocation5 [shape = 'u8[65536]{0}', space=vmem, size = 0x10000, scoped, tag = 'input window, operand 1, single buffered']
    #allocation6 [shape = 's32[1]{0}', space=sflag, size = 0x4, scoped, tag = 'scoped memory for tpu_custom_call.1']
    #allocation7 [shape = 'u8[8192]{0}', space=vmem, size = 0x2000, scoped, tag = 'output window, operand 0']
    %8 = vsyncpa [#allocation3], 0
    %s9 = scalar_lea.sflag [#allocation3], 1
    %10 = vsyncpa %s9, 0
    %11 = vsyncpa [#allocation6], 0
    %12 = vsyncpa [#allocation4], 0
    %s13 = scalar_lea.sflag [#allocation4], 1
    %14 = vsyncpa %s13, 0
    loop: start=0, step=1, limit=4
    $region2: #{tpu_custom_call.1} parent=1 // loop_pre_header
      _
    $region3: #{tpu_custom_call.1} parent=1 // loop_header
      %s16 = sphi 0, %s20
      %p17 = scmp.ge.s32.totalorder %s16, 4
      %s23 = sphi 0, %s35
      %s24 = sphi 0, %s31
      %s25 = sphi 0, %s23
      %s26 = sphi 0, %s24
      %s27 = sphi 0, %s25
      %s28 = sphi 0, %s26
      %s38 = sphi 0, %s40
      %s41 = sphi 0, %s38
      %s42 = sphi 0, %s41
      %s58 = sphi 0, %s42
      %s64 = sphi 0, %s66
      %s67 = sphi 0, %s64
      %s68 = sphi 0, %s67
      %s84 = sphi 0, %s68
      %s90 = sphi 0, %s92
      %s93 = sphi 0, %s90
      %s94 = sphi 0, %s93
      %s110 = sphi 0, %s94
      %s118 = sphi 0, %s120
      %s121 = sphi 0, %s118
      %s122 = sphi 0, %s121
      %s138 = sphi 0, %s122
    $region4: #{tpu_custom_call.1} parent=1 // loop_header_branch
      %19 = sbr.rel (%p17) target = $region8
    $region5: #{tpu_custom_call.1} parent=1 // loop_body
      %s21 = ssub.s32 %s16, 1
      %s22 = ssub.s32 %s16, 2
      %s29 = sadd.s32 1, %s24
      %p30 = scmp.ge.s32.totalorder %s29, 1
      %s31 = scalar_select %p30, 0, %s29
      %s32 = sadd.s32 1, %s23
      %s33 = scalar_select %p30, %s32, %s23
      %p34 = scmp.ge.s32.totalorder %s33, 2
      %s35 = scalar_select %p34, 0, %s33
      %s36 = ssub.s32 %s23, %s35
      %p37 = scmp.eq.s32.totalorder %s36, 0
      %s39 = sadd.s32 %s38, 1
      %s40 = scalar_select %p37, %s38, %s39
      %p43 = pneg %p37
      %p44 = scmp.eq.s32.totalorder %s16, 1
      %p45 = por %p43, %p44
      %p46 = scmp.ne.s32.totalorder %s38, %s41
      %p47 = scmp.eq.s32.totalorder %s16, 0
      %p48 = por %p46, %p47
      %p49 = scmp.ne.s32.totalorder %s38, %s41
      %p50 = scmp.eq.s32.totalorder %s21, 1
      %p51 = por %p49, %p50
      %p52 = scmp.ne.s32.totalorder %s41, %s42
      %p53 = scmp.eq.s32.totalorder %s21, 0
      %p54 = por %p52, %p53
      %p55 = scmp.ne.s32.totalorder %s41, %s42
      %p56 = scmp.eq.s32.totalorder %s22, 1
      %p57 = por %p55, %p56
      %p59 = scmp.ne.s32.totalorder %s42, %s58
      %p60 = scmp.eq.s32.totalorder %s22, 0
      %p61 = por %p59, %p60
      %s62 = ssub.s32 %s24, %s31
      %p63 = scmp.eq.s32.totalorder %s62, 0
      %s65 = sadd.s32 %s64, 1
      %s66 = scalar_select %p63, %s64, %s65
      %p69 = pneg %p63
      %p70 = scmp.eq.s32.totalorder %s16, 1
      %p71 = por %p69, %p70
      %p72 = scmp.ne.s32.totalorder %s64, %s67
      %p73 = scmp.eq.s32.totalorder %s16, 0
      %p74 = por %p72, %p73
      %p75 = scmp.ne.s32.totalorder %s64, %s67
      %p76 = scmp.eq.s32.totalorder %s21, 1
      %p77 = por %p75, %p76
      %p78 = scmp.ne.s32.totalorder %s67, %s68
      %p79 = scmp.eq.s32.totalorder %s21, 0
      %p80 = por %p78, %p79
      %p81 = scmp.ne.s32.totalorder %s67, %s68
      %p82 = scmp.eq.s32.totalorder %s22, 1
      %p83 = por %p81, %p82
      %p85 = scmp.ne.s32.totalorder %s68, %s84
      %p86 = scmp.eq.s32.totalorder %s22, 0
      %p87 = por %p85, %p86
      %s88 = ssub.s32 %s24, %s31
      %p89 = scmp.eq.s32.totalorder %s88, 0
      %s91 = sadd.s32 %s90, 1
      %s92 = scalar_select %p89, %s90, %s91
      %p95 = pneg %p89
      %p96 = scmp.eq.s32.totalorder %s16, 1
      %p97 = por %p95, %p96
      %p98 = scmp.ne.s32.totalorder %s90, %s93
      %p99 = scmp.eq.s32.totalorder %s16, 0
      %p100 = por %p98, %p99
      %p101 = scmp.ne.s32.totalorder %s90, %s93
      %p102 = scmp.eq.s32.totalorder %s21, 1
      %p103 = por %p101, %p102
      %p104 = scmp.ne.s32.totalorder %s93, %s94
      %p105 = scmp.eq.s32.totalorder %s21, 0
      %p106 = por %p104, %p105
      %p107 = scmp.ne.s32.totalorder %s93, %s94
      %p108 = scmp.eq.s32.totalorder %s22, 1
      %p109 = por %p107, %p108
      %p111 = scmp.ne.s32.totalorder %s94, %s110
      %p112 = scmp.eq.s32.totalorder %s22, 0
      %p113 = por %p111, %p112
      %s114 = ssub.s32 %s23, %s35
      %s115 = ssub.s32 %s24, %s31
      %s116 = sor.u32 %s114, %s115
      %p117 = scmp.eq.s32.totalorder %s116, 0
      %s119 = sadd.s32 %s118, 1
      %s120 = scalar_select %p117, %s118, %s119
      %p123 = pneg %p117
      %p124 = scmp.eq.s32.totalorder %s16, 1
      %p125 = por %p123, %p124
      %p126 = scmp.ne.s32.totalorder %s118, %s121
      %p127 = scmp.eq.s32.totalorder %s16, 0
      %p128 = por %p126, %p127
      %p129 = scmp.ne.s32.totalorder %s118, %s121
      %p130 = scmp.eq.s32.totalorder %s21, 1
      %p131 = por %p129, %p130
      %p132 = scmp.ne.s32.totalorder %s121, %s122
      %p133 = scmp.eq.s32.totalorder %s21, 0
      %p134 = por %p132, %p133
      %p135 = scmp.ne.s32.totalorder %s121, %s122
      %p136 = scmp.eq.s32.totalorder %s22, 1
      %p137 = por %p135, %p136
      %p139 = scmp.ne.s32.totalorder %s122, %s138
      %p140 = scmp.eq.s32.totalorder %s22, 0
      %p141 = por %p139, %p140
      %p142 = scmp.le.s32.totalorder 1, %s16
      %p143 = scmp.lt.s32.totalorder %s16, 3
      %p144 = pnand %p142, %p143
      %p145 = pneg %p144
      // Predicated region
      $region9: #{tpu_custom_call.1} parent=5 // pred_check
        _
      $region10: #{tpu_custom_call.1} parent=5 // pred_check_branch
        %147 = sbr.rel (%p144) target = $region12
      $region11: #{tpu_custom_call.1} parent=5 // pred_region
        %s148 = ssub.s32 %s16, 1
        // Predicated region
        $region13: #{tpu_custom_call.1} parent=11 // pred_check
          %p149 = pneg %p80
        $region14: #{tpu_custom_call.1} parent=11 // pred_check_branch
          %151 = sbr.rel (%p149) target = $region16
        $region15: #{tpu_custom_call.1} parent=11 // pred_region
          %153 = vsyncadd [#allocation6], 0
          %s154 = smul.addr %s26, 8
          %s155 = scalar_lea.hbm %s1, %s154
          %s156 = sshll.u32 %s155, 4
          %s157 = int_to_ptr.hbm [resolvable:$true] %s156
          %s158 = sshll.u32 [#allocation5], 4
          %s159 = int_to_ptr.vmem [resolvable:$true] %s158
          %164 = dma.hbm_to_vmem [thread:$0]  %s157, 2048, %s159, [#allocation6], 128, 128, 8
        $region16: #{tpu_custom_call.1} parent=11 // pred_fallthru
          _
        // Predicated region
        $region17: #{tpu_custom_call.1} parent=11 // pred_check
          %p165 = pneg %p106
        $region18: #{tpu_custom_call.1} parent=11 // pred_check_branch
          %167 = sbr.rel (%p165) target = $region20
        $region19: #{tpu_custom_call.1} parent=11 // pred_region
          %p168 = scmp.lt.s32.totalorder %s26, 0
          %s169 = scalar_select %p168, %s26, 0
          %s170 = scalar_lea.vmem %s2, %s169
        $region20: #{tpu_custom_call.1} parent=11 // pred_fallthru
          _
      $region12: #{tpu_custom_call.1} parent=5 // pred_fallthru
        _
      %p171 = scmp.lt.s32.totalorder %s16, 2
      // Predicated region
      $region21: #{tpu_custom_call.1} parent=5 // pred_check
        %p172 = pneg %p171
      $region22: #{tpu_custom_call.1} parent=5 // pred_check_branch
        %174 = sbr.rel (%p172) target = $region24
      $region23: #{tpu_custom_call.1} parent=5 // pred_region
        // Predicated region
        $region25: #{tpu_custom_call.1} parent=23 // pred_check
          %p175 = pneg %p48
        $region26: #{tpu_custom_call.1} parent=23 // pred_check_branch
          %177 = sbr.rel (%p175) target = $region28
        $region27: #{tpu_custom_call.1} parent=23 // pred_region
          %s178 = sand.u32 %s38, 1
          %s179 = scalar_lea.sflag [#allocation3], %s178
          %s180 = sand.u32 %s38, 1
          %s181 = smul.addr %s180, 8
          %s182 = scalar_lea.vmem [#allocation2], %s181
          %184 = vsyncadd %s179, 0
          %s185 = smul.addr %s23, 8
          %s186 = scalar_lea.hbm %s0, %s185
          %s188 = sshll.u32 %s186, 4
          %s189 = int_to_ptr.hbm [resolvable:$true] %s188
          %s190 = sshll.u32 %s182, 4
          %s191 = int_to_ptr.vmem [resolvable:$true] %s190
          %193 = dma.hbm_to_vmem [thread:$0]  %s189, 128, %s191, %s179
        $region28: #{tpu_custom_call.1} parent=23 // pred_fallthru
          _
      $region24: #{tpu_custom_call.1} parent=5 // pred_fallthru
        _
      %p194 = scmp.le.s32.totalorder 1, %s16
      %p195 = scmp.lt.s32.totalorder %s16, 3
      %p196 = pnand %p194, %p195
      %p197 = pneg %p196
      // Predicated region
      $region29: #{tpu_custom_call.1} parent=5 // pred_check
        _
      $region30: #{tpu_custom_call.1} parent=5 // pred_check_branch
        %199 = sbr.rel (%p196) target = $region32
      $region31: #{tpu_custom_call.1} parent=5 // pred_region
        %s200 = ssub.s32 %s16, 1
        %s201 = sand.u32 %s41, 1
        %s202 = scalar_lea.sflag [#allocation3], %s201
        %s203 = sand.u32 %s41, 1
        %s204 = smul.addr %s203, 8
        %s205 = scalar_lea.vmem [#allocation2], %s204
        // Predicated region
        $region33: #{tpu_custom_call.1} parent=31 // pred_check
          %p206 = pneg %p54
        $region34: #{tpu_custom_call.1} parent=31 // pred_check_branch
          %208 = sbr.rel (%p206) target = $region36
        $region35: #{tpu_custom_call.1} parent=31 // pred_region
          %210 = dma.done %s202, 128
        $region36: #{tpu_custom_call.1} parent=31 // pred_fallthru
          _
        // Predicated region
        $region37: #{tpu_custom_call.1} parent=31 // pred_check
          %p211 = pneg %p80
        $region38: #{tpu_custom_call.1} parent=31 // pred_check_branch
          %213 = sbr.rel (%p211) target = $region40
        $region39: #{tpu_custom_call.1} parent=31 // pred_region
          %215 = dma.done [#allocation6], 2048
        $region40: #{tpu_custom_call.1} parent=31 // pred_fallthru
          _
        %s216 = sand.u32 %s41, 1
        %s217 = scalar_lea.sflag [#allocation3], %s216
        %s218 = sand.u32 %s41, 1
        %s219 = smul.addr %s218, 8
        %s220 = scalar_lea.vmem [#allocation2], %s219
        %p221 = pneg %p54
        %p222 = pneg %p51
        %p223 = pneg %p80
        %p224 = pneg %p77
        %p225 = scmp.lt.s32.totalorder %s26, 0
        %s226 = scalar_select %p225, %s26, 0
        %s227 = scalar_lea.vmem %s2, %s226
        %p228 = pneg %p106
        %p229 = pneg %p103
        %p230 = pneg %p134
        %p231 = pneg %p131
        %s232 = sand.u32 %s121, 1
        %s233 = scalar_lea.sflag [#allocation4], %s232
        %s234 = sand.u32 %s121, 1
        %s235 = smul.addr %s234, 8
        %s236 = scalar_lea.vmem [#allocation7], %s235
        %p237 = scmp.lt.s32.totalorder %s26, 0
        %s238 = scalar_select %p237, %s26, 0
        %s239 = scalar_lea.vmem %s2, %s238
        %v240 = vld [vmem:[%s205] sm:$0xff]
        %241 = vadd.xlane.f32.xlu0 %v240
        %v242 = vpop.xlane.xlu0 %241
        %v243 = vmul.f32 %v242, 0.03125
        %v244 = vmul.f32 %v240, %v240
        %245 = vadd.xlane.f32.xlu0 %v244
        %v246 = vpop.xlane.xlu0 %245
        %v247 = vmul.f32 %v246, 0.03125
        %v248 = vmul.f32 %v243, %v243
        %v249 = vsub.f32 %v247, %v248
        %v250 = vadd.f32 %v249, 1e-05
        %v251 = vrsqrt.pop %v250
        %v252 = vmul.f32 %v251, %v250
        %v253 = vmul.f32 %v252, %v251
        %v254 = vmul.f32 0.5, %v253
        %v255 = vsub.f32 1.5, %v254
        %v256 = vmul.f32 %v251, %v255
        %vm257 = vweird.f32 %v250
        %vm258 = vweird.f32 %v251
        %vm259 = vmor %vm257, %vm258
        %v260 = vsel %vm259, %v251, %v256
        %v261 = vsub.f32 %v240, %v243
        %v262 = vmul.f32 %v261, %v260
        %v263 = vld [vmem:[#allocation5] sm:$0xff]
        %v264 = vld [vmem:[#allocation5 + $0x8] sm:$0xff]
        %v265 = vld [vmem:[#allocation5 + $0x10] sm:$0xff]
        %v266 = vld [vmem:[#allocation5 + $0x18] sm:$0xff]
        %v267 = vld [vmem:[#allocation5 + $0x20] sm:$0xff]
        %v268 = vld [vmem:[#allocation5 + $0x28] sm:$0xff]
        %v269 = vld [vmem:[#allocation5 + $0x30] sm:$0xff]
        %v270 = vld [vmem:[#allocation5 + $0x38] sm:$0xff]
        %v271 = vld [vmem:[#allocation5 + $0x40] sm:$0xff]
        %v272 = vld [vmem:[#allocation5 + $0x48] sm:$0xff]
        %v273 = vld [vmem:[#allocation5 + $0x50] sm:$0xff]
        %v274 = vld [vmem:[#allocation5 + $0x58] sm:$0xff]
        %v275 = vld [vmem:[#allocation5 + $0x60] sm:$0xff]
        %v276 = vld [vmem:[#allocation5 + $0x68] sm:$0xff]
        %v277 = vld [vmem:[#allocation5 + $0x70] sm:$0xff]
        %v278 = vld [vmem:[#allocation5 + $0x78] sm:$0xff]
        %v279 = vld [vmem:[%s239] sm:$0x1]
        %v281 = vperm.slane %v279, 0
        %283 = vmatpush.msra.mxu0 %v278
        %284 = vmatpush.msra.mxu0 %v277
        %285 = vmatpush.msra.mxu0 %v276
        %286 = vmatpush.msra.mxu0 %v275
        %287 = vmatpush.msra.mxu0 %v274
        %288 = vmatpush.msra.mxu0 %v273
        %289 = vmatpush.msra.mxu0 %v272
        %290 = vmatpush.msra.mxu0 %v271
        %291 = vmatpush.msra.mxu0 %v270
        %292 = vmatpush.msra.mxu0 %v269
        %293 = vmatpush.msra.mxu0 %v268
        %294 = vmatpush.msra.mxu0 %v267
        %295 = vmatpush.msra.mxu0 %v266
        %296 = vmatpush.msra.mxu0 %v265
        %297 = vmatpush.msra.mxu0 %v264
        %298 = vmatpush.msra.mxu0 %v263
        %299 = vmatmul.f32.gmra.mxu0 %v262
        %v300 = vpop.f32.mrf.mxu0
        %v301 = vadd.f32 %v281, %v300
        %302 = vdwg.mxu0
        %303 = vst [vmem:[%s236] sm:$0xff] %v301
        %s304 = sand.u32 %s121, 1
        %s305 = scalar_lea.sflag [#allocation4], %s304
        %s306 = sand.u32 %s121, 1
        %s307 = smul.addr %s306, 8
        %s308 = scalar_lea.vmem [#allocation7], %s307
        // Predicated region
        $region41: #{tpu_custom_call.1} parent=31 // pred_check
          %p309 = pneg %p131
        $region42: #{tpu_custom_call.1} parent=31 // pred_check_branch
          %311 = sbr.rel (%p309) target = $region44
        $region43: #{tpu_custom_call.1} parent=31 // pred_region
          %313 = vsyncadd %s305, 0
          %s314 = sadd.s32 %s26, %s25
          %s315 = smul.addr %s314, 8
          %s316 = scalar_lea.hbm %s3, %s315
          %s318 = sshll.u32 %s308, 4
          %s319 = int_to_ptr.vmem [resolvable:$true] %s318
          %s320 = sshll.u32 %s316, 4
          %s321 = int_to_ptr.hbm [resolvable:$true] %s320
          %323 = dma.vmem_to_hbm [thread:$0]  %s319, 128, %s321, %s305
        $region44: #{tpu_custom_call.1} parent=31 // pred_fallthru
          _
      $region32: #{tpu_custom_call.1} parent=5 // pred_fallthru
        _
      %p324 = scmp.le.s32.totalorder 2, %s16
      // Predicated region
      $region45: #{tpu_custom_call.1} parent=5 // pred_check
        %p325 = pneg %p324
      $region46: #{tpu_custom_call.1} parent=5 // pred_check_branch
        %327 = sbr.rel (%p325) target = $region48
      $region47: #{tpu_custom_call.1} parent=5 // pred_region
        %s328 = ssub.s32 %s16, 2
        // Predicated region
        $region49: #{tpu_custom_call.1} parent=47 // pred_check
          %p329 = pneg %p137
        $region50: #{tpu_custom_call.1} parent=47 // pred_check_branch
          %331 = sbr.rel (%p329) target = $region52
        $region51: #{tpu_custom_call.1} parent=47 // pred_region
          %s332 = sand.u32 %s122, 1
          %s333 = scalar_lea.sflag [#allocation4], %s332
          %s334 = sand.u32 %s122, 1
          %s335 = smul.addr %s334, 8
          %s336 = scalar_lea.vmem [#allocation7], %s335
          %338 = dma.done %s333, 128
        $region52: #{tpu_custom_call.1} parent=47 // pred_fallthru
          _
      $region48: #{tpu_custom_call.1} parent=5 // pred_fallthru
        _
    $region6: #{tpu_custom_call.1} parent=1 // loop_footer
      %s20 = sadd.s32 1, %s16
    $region7: #{tpu_custom_call.1} parent=1 // loop_footer_branch
      %15 = sbr.rel target = $region3
    $region8: #{tpu_custom_call.1} parent=1 // loop_exit
      _
    %339 = vsyncpa [#allocation3], 1
    %s340 = scalar_lea.sflag [#allocation3], 1
    %341 = vsyncpa %s340, 1
    %342 = vsyncpa [#allocation6], 1
    %343 = vsyncpa [#allocation4], 1
    %s344 = scalar_lea.sflag [#allocation4], 1
    %345 = vsyncpa %s344, 1

</llo_original>
